<compile_context>
chip_gen: v7x
topology: tpu7x:2x2x1
jax: 0.10.0
libtpu: 0.0.40
codegen_flags: <defaults>
</compile_context>

<pallas_src>
import functools

import jax
import jax.numpy as jnp
from jax.experimental import pallas as pl
from jax.experimental.pallas import tpu as pltpu

LANES = 128
SUBLANES = 8


def _cdiv(a, b):
    return -(-a // b)


def _round_up(x, m):
    return _cdiv(x, m) * m


def _largest_divisor(n, candidates=(64, 32, 16, 8)):
    for c in candidates:
        if n % c == 0:
            return c
    return SUBLANES


def _chip_defaults():
    """(num_shards, target_tile_rows) per chip generation.

    * v5e / v6e have one TensorCore -> 1 shard (a second shard on a
      sequential grid only risks wasted clamped-duplicate tiles).
    * v7x has 2 TCs, each with ~3.2 TB/s to HBM -> 2 shards on the leading
      "parallel" grid axis.
    * tile rows: 4096 (2 MiB f32/tile, 8 MiB double-buffered inputs) fits
      v5e's 16 MiB default scoped VMEM; 8192 (16 MiB of input buffers) fits
      the 32 MiB default on v6e / v7x.
    """
    try:
        kind = jax.devices()[0].device_kind.lower()
    except Exception:
        return 1, 4096
    if "v5" in kind and ("lite" in kind or "v5e" in kind):
        return 1, 4096          # v5e: single TC, 16 MiB default scoped VMEM
    if "v6" in kind:
        return 1, 8192          # v6e: single TC, 32 MiB default scoped VMEM
    if "v7" in kind:
        return 2, 8192          # v7x: 2 TCs/chip, 32 MiB default scoped VMEM
    return 2, 4096              # v4/v5p megacore or unknown: conservative


def _masked_l1_kernel(x_ref, y_ref, sum_ref, cnt_ref, *,
                      maxdisp, rows, tile_rows, shard_tiles, acc_rows,
                      all_full):
    c = pl.program_id(0)   # shard (parallel axis)
    j = pl.program_id(1)   # row-tile within shard (reduction axis)

    # Zero the resident per-shard accumulator blocks at the start of a shard.
    @pl.when(j == 0)
    def _():
        sum_ref[...] = jnp.zeros_like(sum_ref)
        cnt_ref[...] = jnp.zeros_like(cnt_ref)

    def accumulate(row_limit):
        # Inputs arrive in their original dtype; cast per-tile in VMEM (VPU).
        x = x_ref[...].astype(jnp.float32)
        y = y_ref[...].astype(jnp.float32)
        mask = x < jnp.float32(maxdisp)
        if row_limit is not None:
            # Partial last tile: rows past the real array end hold garbage
            # (VMEM is not bounds checked) and must never reach sum/count.
            rid = jax.lax.broadcasted_iota(jnp.int32, (tile_rows, LANES), 0)
            mask = jnp.logical_and(mask, rid < row_limit)
        diff = jnp.where(mask, jnp.abs(x - y), jnp.float32(0.0))
        ones = jnp.where(mask, jnp.float32(1.0), jnp.float32(0.0))
        # Fold the (tile_rows, 128) tile into a WIDE (acc_rows, 128) resident
        # accumulator: acc_rows/8 independent vreg add chains hide VPU latency
        # (vs. one long dependent chain into an (8,128) block).  f32 count
        # keeps sum/count on the identical add pattern.
        sum_ref[...] += jnp.sum(diff.reshape(-1, acc_rows, LANES), axis=0)
        cnt_ref[...] += jnp.sum(ones.reshape(-1, acc_rows, LANES), axis=0)

    if all_full:
        # Every grid slot maps to a full, in-range tile: single lean path.
        accumulate(None)
    else:
        tile_start = (c * shard_tiles + j) * tile_rows

        @pl.when(tile_start + tile_rows <= rows)
        def _():                          # full interior tile: fast path
            accumulate(None)

        @pl.when(jnp.logical_and(tile_start < rows,
                                 tile_start + tile_rows > rows))
        def _():                          # partial last tile: mask tail rows
            accumulate(rows - tile_start)
        # Slots with tile_start >= rows are clamped duplicates: compute
        # skipped entirely (their DMA is clamped to the last real block).


def input_output_loss(inp, out, maxdisp, *, num_shards=None,
                      target_tile_rows=None):
    """Masked L1 loss, matching InputOutputLoss.forward semantics.

    inp, out: arrays of identical shape (e.g. NCHW [N, C, H, W]).
    Returns a scalar float32 loss (NaN if no element is below maxdisp).
    """
    assert inp.shape == out.shape
    n = inp.size

    x_flat = jnp.ravel(inp)   # reshape of contiguous array: no HBM copy
    y_flat = jnp.ravel(out)

    granule = SUBLANES * LANES               # 1024
    n_main = (n // granule) * granule        # kernel-covered prefix

    total_sum = jnp.float32(0.0)
    total_cnt = jnp.float32(0.0)

    if n_main > 0:
        x_main = x_flat if n_main == n else x_flat[:n_main]
        y_main = y_flat if n_main == n else y_flat[:n_main]

        rows = n_main // LANES               # always a multiple of 8
        x2d = x_main.reshape(rows, LANES)
        y2d = y_main.reshape(rows, LANES)

        d_shards, d_tile = _chip_defaults()
        if num_shards is None:
            num_shards = d_shards
        if target_tile_rows is None:
            target_tile_rows = d_tile

        tile_rows = min(target_tile_rows, rows)
        num_real_tiles = _cdiv(rows, tile_rows)
        num_shards = max(1, min(num_shards, num_real_tiles))
        shard_tiles = _cdiv(num_real_tiles, num_shards)
        total_tiles = num_shards * shard_tiles

        if total_tiles != num_real_tiles:
            # Rebalance tile size so every grid slot maps to a distinct real
            # tile: no wasted clamped-duplicate HBM reads when the tile count
            # doesn't split evenly across shards.  Keep tile_rows a multiple
            # of 64 (wide-accumulator fold) when rows allow, else of 8.
            gran = 64 if rows >= 64 * total_tiles else SUBLANES
            tile_rows = _round_up(_cdiv(rows, total_tiles), gran)
            num_real_tiles = _cdiv(rows, tile_rows)

        acc_rows = _largest_divisor(tile_rows)
        all_full = (total_tiles * tile_rows == rows)

        kernel = functools.partial(
            _masked_l1_kernel,
            maxdisp=float(maxdisp), rows=rows, tile_rows=tile_rows,
            shard_tiles=shard_tiles, acc_rows=acc_rows, all_full=all_full)

        last_block = num_real_tiles - 1

        def in_map(c, j):
            # Clamp so grid slots past the last real tile never issue an
            # out-of-range block DMA (their compute is skipped in-kernel).
            return (jnp.minimum(c * shard_tiles + j, last_block), 0)

        cost = pl.CostEstimate(
            flops=7 * n_main,
            transcendentals=0,
            bytes_accessed=n_main * (x2d.dtype.itemsize + y2d.dtype.itemsize)
            + 2 * num_shards * acc_rows * LANES * 4,
        )

        sum_out, cnt_out = pl.pallas_call(
            kernel,
            out_shape=(
                jax.ShapeDtypeStruct((num_shards * acc_rows, LANES),
                                     jnp.float32),
                jax.ShapeDtypeStruct((num_shards * acc_rows, LANES),
                                     jnp.float32),
            ),
            grid_spec=pltpu.PrefetchScalarGridSpec(
                num_scalar_prefetch=0,
                grid=(num_shards, shard_tiles),
                in_specs=[
                    pl.BlockSpec((tile_rows, LANES), in_map),
                    pl.BlockSpec((tile_rows, LANES), in_map),
                ],
                out_specs=[
                    pl.BlockSpec((acc_rows, LANES), lambda c, j: (c, 0)),
                    pl.BlockSpec((acc_rows, LANES), lambda c, j: (c, 0)),
                ],
            ),
            compiler_params=pltpu.CompilerParams(
                dimension_semantics=("parallel", "arbitrary"),
            ),
            cost_estimate=cost,
        )(x2d, y2d)

        total_sum = total_sum + jnp.sum(sum_out)
        total_cnt = total_cnt + jnp.sum(cnt_out)

    if n_main < n:
        # <1024-element tail (only for sizes not a multiple of 8*128);
        # folding it in with plain JAX avoids padding/copying the whole tensor.
        tx = x_flat[n_main:].astype(jnp.float32)
        ty = y_flat[n_main:].astype(jnp.float32)
        tmask = tx < jnp.float32(maxdisp)
        total_sum = total_sum + jnp.sum(jnp.where(tmask, jnp.abs(tx - ty), 0.0))
        total_cnt = total_cnt + jnp.sum(tmask.astype(jnp.float32))

    # mean over masked elements (0 masked -> 0/0 -> NaN, like torch .mean())
    return (total_sum / total_cnt).astype(jnp.float32)


if __name__ == "__main__":
    maxdisp = 192.0

    def ref_loss(a, b):
        m = a < maxdisp
        return jnp.sum(jnp.where(m, jnp.abs(a - b), 0.0)) / jnp.sum(m)

    key = jax.random.PRNGKey(0)
    k1, k2, k3, k4 = jax.random.split(key, 4)

    # Primary small NCHW case (fully covered by the kernel, one full tile).
    inp = jax.random.uniform(k1, (2, 4, 16, 16), jnp.float32, 0.0, 256.0)
    out = jax.random.uniform(k2, (2, 4, 16, 16), jnp.float32, 0.0, 256.0)
    loss = jax.block_until_ready(input_output_loss(inp, out, maxdisp))
    assert jnp.allclose(loss, ref_loss(inp, out), rtol=1e-5, atol=1e-5), (
        loss, ref_loss(inp, out))

    # Exercise 2-shard / full-tile / skipped-duplicate paths with a forced
    # tiny tiling (24 rows of 128 lanes, tile_rows=8, 2 shards).
    inp2 = jax.random.uniform(k3, (2, 4, 24, 16), jnp.float32, 0.0, 256.0)
    out2 = jax.random.uniform(k4, (2, 4, 24, 16), jnp.float32, 0.0, 256.0)
    loss2 = jax.block_until_ready(
        input_output_loss(inp2, out2, maxdisp, num_shards=2,
                          target_tile_rows=8))
    assert jnp.allclose(loss2, ref_loss(inp2, out2), rtol=1e-5, atol=1e-5), (
        loss2, ref_loss(inp2, out2))

    # Exercise the in-kernel partial-last-tile path (24 rows, tile_rows=16).
    loss2b = jax.block_until_ready(
        input_output_loss(inp2, out2, maxdisp, num_shards=1,
                          target_tile_rows=16))
    assert jnp.allclose(loss2b, ref_loss(inp2, out2), rtol=1e-5, atol=1e-5), (
        loss2b, ref_loss(inp2, out2))

    # Non-multiple-of-1024 size: <1024-element tail handled in plain JAX.
    inp3 = jax.random.uniform(k1, (2, 4, 16, 17), jnp.float32, 0.0, 256.0)
    out3 = jax.random.uniform(k2, (2, 4, 16, 17), jnp.float32, 0.0, 256.0)
    loss3 = jax.block_until_ready(input_output_loss(inp3, out3, maxdisp))
    assert jnp.allclose(loss3, ref_loss(inp3, out3), rtol=1e-5, atol=1e-5), (
        loss3, ref_loss(inp3, out3))

    print("KERNEL_OK")
</pallas_src>

<mosaic_0001>
module attributes {stable_mosaic.version = 11 : i64} {
  func.func @_masked_l1_kernel(%arg0: i32, %arg1: i32, %arg2: memref<16x128xf32, #tpu.memory_space<vmem>>, %arg3: memref<16x128xf32, #tpu.memory_space<vmem>>, %arg4: memref<16x128xf32, #tpu.memory_space<vmem>>, %arg5: memref<16x128xf32, #tpu.memory_space<vmem>>) attributes {dimension_semantics = [#tpu.dimension_semantics<parallel>, #tpu.dimension_semantics<arbitrary>], iteration_bounds = array<i64: 1, 1>, scalar_prefetch = 0 : i64, scratch_operands = 0 : i64, tpu.core_type = #tpu.core_type<tc>, window_params = [{transform_indices = @transform_0, window_bounds = array<i64: 16, 128>}, {transform_indices = @transform_1, window_bounds = array<i64: 16, 128>}, {transform_indices = @transform_2, window_bounds = array<i64: 16, 128>}, {transform_indices = @transform_3, window_bounds = array<i64: 16, 128>}]} {
    %c0_i32 = arith.constant 0 : i32
    %0 = arith.cmpi eq, %arg1, %c0_i32 : i32
    %1 = arith.extui %0 : i1 to i32
    %c0_i32_0 = arith.constant 0 : i32
    %2 = arith.cmpi ne, %1, %c0_i32_0 : i32
    scf.if %2 {
      %cst_17 = arith.constant 0.000000e+00 : f32
      %24 = vector.broadcast %cst_17 : f32 to vector<16x128xf32>
      %c0_18 = arith.constant 0 : index
      %c0_19 = arith.constant 0 : index
      %25 = vector.load %arg4[%c0_18, %c0_19] : memref<16x128xf32, #tpu.memory_space<vmem>>, vector<16x128xf32>
      tpu.vector_store %arg4[%c0_18, %c0_19], %24 {strides = array<i32>} : memref<16x128xf32, #tpu.memory_space<vmem>>, vector<16x128xf32>,
      %cst_20 = arith.constant 0.000000e+00 : f32
      %26 = vector.broadcast %cst_20 : f32 to vector<16x128xf32>
      %c0_21 = arith.constant 0 : index
      %c0_22 = arith.constant 0 : index
      %27 = vector.load %arg5[%c0_21, %c0_22] : memref<16x128xf32, #tpu.memory_space<vmem>>, vector<16x128xf32>
      tpu.vector_store %arg5[%c0_21, %c0_22], %26 {strides = array<i32>} : memref<16x128xf32, #tpu.memory_space<vmem>>, vector<16x128xf32>,
    } else {
    }
    %c0 = arith.constant 0 : index
    %c0_1 = arith.constant 0 : index
    %3 = vector.load %arg2[%c0, %c0_1] : memref<16x128xf32, #tpu.memory_space<vmem>>, vector<16x128xf32>
    %c0_2 = arith.constant 0 : index
    %c0_3 = arith.constant 0 : index
    %4 = vector.load %arg3[%c0_2, %c0_3] : memref<16x128xf32, #tpu.memory_space<vmem>>, vector<16x128xf32>
    %cst = arith.constant 1.920000e+02 : f32
    %5 = vector.broadcast %cst : f32 to vector<16x128xf32>
    %6 = arith.cmpf olt, %3, %5 : vector<16x128xf32>
    %7 = arith.subf %3, %4 : vector<16x128xf32>
    %8 = math.absf %7 : vector<16x128xf32>
    %cst_4 = arith.constant 0.000000e+00 : f32
    %9 = vector.broadcast %cst_4 : f32 to vector<16x128xf32>
    %10 = arith.select %6, %8, %9 : vector<16x128xi1>, vector<16x128xf32>
    %cst_5 = arith.constant 1.000000e+00 : f32
    %cst_6 = arith.constant 0.000000e+00 : f32
    %11 = vector.broadcast %cst_5 : f32 to vector<16x128xf32>
    %12 = vector.broadcast %cst_6 : f32 to vector<16x128xf32>
    %13 = arith.select %6, %11, %12 : vector<16x128xi1>, vector<16x128xf32>
    %c0_7 = arith.constant 0 : index
    %c0_8 = arith.constant 0 : index
    %14 = vector.load %arg4[%c0_7, %c0_8] : memref<16x128xf32, #tpu.memory_space<vmem>>, vector<16x128xf32>
    %15 = vector.shape_cast %10 : vector<16x128xf32> to vector<1x16x128xf32>
    %cst_9 = arith.constant dense<0.000000e+00> : vector<16x128xf32>
    %16 = vector.multi_reduction <add>, %15, %cst_9 [0] : vector<1x16x128xf32> to vector<16x128xf32>
    %17 = arith.addf %14, %16 : vector<16x128xf32>
    %c0_10 = arith.constant 0 : index
    %c0_11 = arith.constant 0 : index
    %18 = vector.load %arg4[%c0_10, %c0_11] : memref<16x128xf32, #tpu.memory_space<vmem>>, vector<16x128xf32>
    tpu.vector_store %arg4[%c0_10, %c0_11], %17 {strides = array<i32>} : memref<16x128xf32, #tpu.memory_space<vmem>>, vector<16x128xf32>,
    %c0_12 = arith.constant 0 : index
    %c0_13 = arith.constant 0 : index
    %19 = vector.load %arg5[%c0_12, %c0_13] : memref<16x128xf32, #tpu.memory_space<vmem>>, vector<16x128xf32>
    %20 = vector.shape_cast %13 : vector<16x128xf32> to vector<1x16x128xf32>
    %cst_14 = arith.constant dense<0.000000e+00> : vector<16x128xf32>
    %21 = vector.multi_reduction <add>, %20, %cst_14 [0] : vector<1x16x128xf32> to vector<16x128xf32>
    %22 = arith.addf %19, %21 : vector<16x128xf32>
    %c0_15 = arith.constant 0 : index
    %c0_16 = arith.constant 0 : index
    %23 = vector.load %arg5[%c0_15, %c0_16] : memref<16x128xf32, #tpu.memory_space<vmem>>, vector<16x128xf32>
    tpu.vector_store %arg5[%c0_15, %c0_16], %22 {strides = array<i32>} : memref<16x128xf32, #tpu.memory_space<vmem>>, vector<16x128xf32>,
    return
  }
  func.func @transform_0(%arg0: i32, %arg1: i32) -> (i32, i32) {
    %c1_i32 = arith.constant 1 : i32
    %0 = arith.muli %arg0, %c1_i32 : i32
    %1 = arith.addi %0, %arg1 : i32
    %c0_i32 = arith.constant 0 : i32
    %2 = arith.minsi %1, %c0_i32 : i32
    %c0_i32_0 = arith.constant 0 : i32
    %c0_i32_1 = arith.constant 0 : i32
    return %2, %c0_i32_0 : i32, i32
  }
  func.func @transform_1(%arg0: i32, %arg1: i32) -> (i32, i32) {
    %c1_i32 = arith.constant 1 : i32
    %0 = arith.muli %arg0, %c1_i32 : i32
    %1 = arith.addi %0, %arg1 : i32
    %c0_i32 = arith.constant 0 : i32
    %2 = arith.minsi %1, %c0_i32 : i32
    %c0_i32_0 = arith.constant 0 : i32
    %c0_i32_1 = arith.constant 0 : i32
    return %2, %c0_i32_0 : i32, i32
  }
  func.func @transform_2(%arg0: i32, %arg1: i32) -> (i32, i32) {
    %c0_i32 = arith.constant 0 : i32
    %c0_i32_0 = arith.constant 0 : i32
    return %arg0, %c0_i32 : i32, i32
  }
  func.func @transform_3(%arg0: i32, %arg1: i32) -> (i32, i32) {
    %c0_i32 = arith.constant 0 : i32
    %c0_i32_0 = arith.constant 0 : i32
    return %arg0, %c0_i32 : i32, i32
  }
}

</mosaic_0001>

<llo_original>
// kernel: tpu_custom_call.1
$region0: #{tpu_custom_call.1}
  #allocation0 [shape = 'u32[]', space=smem, size = 0x4, offset = 0x4, fixed_abs, tag = 'smem constant byte address 0x4 - core index']
  #allocation1 [shape = 'u32[144,128]{1,0:T(1,128)}', space=vmem, size = 0x12000, scoped, tag = 'internal scratch']
  %s0 = inlined_call_operand.hbm [shape: f32[16,128], index: 0, kind: input, shape index: {}]
  %s1 = inlined_call_operand.hbm [shape: f32[16,128], index: 1, kind: input, shape index: {}]
  %s2 = inlined_call_operand.hbm [shape: f32[16,128], index: 2, kind: output, shape index: {0}]
  %s3 = inlined_call_operand.hbm [shape: f32[16,128], index: 3, kind: output, shape index: {1}]
  %4 = xla_tuple %s2, %s3
  %s5 = sld [smem:[#allocation0]]
  $region38: #{tpu_custom_call.1} parent=0
    _
  %s7 = ssub.s32 1, %s5
  %s8 = scalar_select 0, %s7, %s5
  $region1: #{tpu_custom_call.1} parent=0
    #allocation2 [shape = 'u8[8192]{0}', space=vmem, size = 0x2000, scoped, tag = 'input window, operand 0, single buffered']
    #allocation3 [shape = 's32[1]{0}', space=sflag, size = 0x4, scoped, tag = 'scoped memory for tpu_custom_call.1']
    #allocation4 [shape = 's32[1]{0}', space=sflag, size = 0x4, scoped, tag = 'scoped memory for tpu_custom_call.1']
    #allocation5 [shape = 'u8[8192]{0}', space=vmem, size = 0x2000, scoped, tag = 'input window, operand 1, single buffered']
    #allocation6 [shape = 's32[1]{0}', space=sflag, size = 0x4, scoped, tag = 'scoped memory for tpu_custom_call.1']
    #allocation7 [shape = 'u8[8192]{0}', space=vmem, size = 0x2000, scoped, tag = 'output window, operand 0, single buffered']
    #allocation8 [shape = 'u8[8192]{0}', space=vmem, size = 0x2000, scoped, tag = 'output window, operand 1, single buffered']
    #allocation9 [shape = 's32[1]{0}', space=sflag, size = 0x4, scoped, tag = 'scoped memory for tpu_custom_call.1']
    %9 = vsyncpa [#allocation3], 0
    %10 = vsyncpa [#allocation6], 0
    %11 = vsyncpa [#allocation4], 0
    %12 = vsyncpa [#allocation9], 0
    // Predicated region
    $region2: #{tpu_custom_call.1} parent=1 // pred_check
      _
    $region3: #{tpu_custom_call.1} parent=1 // pred_check_branch
      %14 = sbr.rel (0) target = $region5
    $region4: #{tpu_custom_call.1} parent=1 // pred_region
      %s15 = sadd.s32 0, 0
      %p16 = scmp.lt.s32.totalorder %s15, 0
      %s17 = scalar_select %p16, %s15, 0
      %s18 = smul.u32 2, %s17
      %s20 = ssub.s32 256, 256
      %21 = vsyncadd [#allocation3], %s20
      %s22 = smul.addr %s18, 128
      %s23 = scalar_lea.hbm %s0, %s22
      %s24 = sshll.u32 [#allocation2], 4
      %s25 = int_to_ptr.vmem [resolvable:$true] %s24
      %30 = dma.hbm_to_vmem [thread:$0]  %s23, 256, %s25, [#allocation3], 128, 128, 8
    $region5: #{tpu_custom_call.1} parent=1 // pred_fallthru
      _
    // Predicated region
    $region6: #{tpu_custom_call.1} parent=1 // pred_check
      _
    $region7: #{tpu_custom_call.1} parent=1 // pred_check_branch
      %32 = sbr.rel (0) target = $region9
    $region8: #{tpu_custom_call.1} parent=1 // pred_region
      %s33 = sadd.s32 0, 0
      %p34 = scmp.lt.s32.totalorder %s33, 0
      %s35 = scalar_select %p34, %s33, 0
      %s36 = smul.u32 2, %s35
      %s38 = ssub.s32 256, 256
      %39 = vsyncadd [#allocation6], %s38
      %s40 = smul.addr %s36, 128
      %s41 = scalar_lea.hbm %s1, %s40
      %s42 = sshll.u32 [#allocation5], 4
      %s43 = int_to_ptr.vmem [resolvable:$true] %s42
      %48 = dma.hbm_to_vmem [thread:$0]  %s41, 256, %s43, [#allocation6], 128, 128, 8
    $region9: #{tpu_custom_call.1} parent=1 // pred_fallthru
      _
    // Predicated region
    $region10: #{tpu_custom_call.1} parent=1 // pred_check
      _
    $region11: #{tpu_custom_call.1} parent=1 // pred_check_branch
      %50 = sbr.rel (0) target = $region13
    $region12: #{tpu_custom_call.1} parent=1 // pred_region
      %51 = dma.done [#allocation3], 256
    $region13: #{tpu_custom_call.1} parent=1 // pred_fallthru
      _
    // Predicated region
    $region14: #{tpu_custom_call.1} parent=1 // pred_check
      _
    $region15: #{tpu_custom_call.1} parent=1 // pred_check_branch
      %53 = sbr.rel (0) target = $region17
    $region16: #{tpu_custom_call.1} parent=1 // pred_region
      %54 = dma.done [#allocation6], 256
    $region17: #{tpu_custom_call.1} parent=1 // pred_fallthru
      _
    %s55 = sadd.s32 0, 0
    %p56 = scmp.lt.s32.totalorder %s55, 0
    %s57 = scalar_select %p56, %s55, 0
    %s58 = smul.u32 2, %s57
    %s59 = sadd.s32 0, 0
    %p60 = scmp.lt.s32.totalorder %s59, 0
    %s61 = scalar_select %p60, %s59, 0
    %s62 = smul.u32 2, %s61
    %p63 = scmp.eq.s32.totalorder 0, 0
    // Predicated region
    $region18: #{tpu_custom_call.1} parent=1 // pred_check
      %p64 = pneg %p63
    $region19: #{tpu_custom_call.1} parent=1 // pred_check_branch
      %66 = sbr.rel (%p64) target = $region21
    $region20: #{tpu_custom_call.1} parent=1 // pred_region
      %67 = vst [vmem:[#allocation7] sm:$0xff] 0.0
      %68 = vst [vmem:[#allocation7 + $0x8] sm:$0xff] 0.0
      %69 = vst [vmem:[#allocation8] sm:$0xff] 0.0
      %70 = vst [vmem:[#allocation8 + $0x8] sm:$0xff] 0.0
    $region21: #{tpu_custom_call.1} parent=1 // pred_fallthru
      _
    %v71 = vld [vmem:[#allocation2] sm:$0xff]
    %v72 = vld [vmem:[#allocation2 + $0x8] sm:$0xff]
    %v73 = vld [vmem:[#allocation5] sm:$0xff]
    %v74 = vld [vmem:[#allocation5 + $0x8] sm:$0xff]
    %vm75 = vcmp.lt.f32.partialorder %v71, 192.0
    %vm76 = vcmp.lt.f32.partialorder %v72, 192.0
    %v77 = vsub.f32 %v71, %v73
    %v78 = vsub.f32 %v72, %v74
    %v79 = vand.u32 2147483647, %v77
    %v80 = vand.u32 2147483647, %v78
    %v81 = vsel %vm75, %v79, 0.0
    %v82 = vsel %vm76, %v80, 0.0
    %v83 = vsel %vm75, 1.0, 0.0
    %v84 = vsel %vm76, 1.0, 0.0
    %v85 = vld [vmem:[#allocation7] sm:$0xff]
    %v86 = vld [vmem:[#allocation7 + $0x8] sm:$0xff]
    %v87 = vadd.f32 %v81, 0.0
    %v88 = vadd.f32 %v82, 0.0
    %v89 = vadd.f32 %v85, %v87
    %v90 = vadd.f32 %v86, %v88
    %91 = vst [vmem:[#allocation7] sm:$0xff] %v89
    %92 = vst [vmem:[#allocation7 + $0x8] sm:$0xff] %v90
    %v93 = vld [vmem:[#allocation8] sm:$0xff]
    %v94 = vld [vmem:[#allocation8 + $0x8] sm:$0xff]
    %v95 = vadd.f32 %v83, 0.0
    %v96 = vadd.f32 %v84, 0.0
    %v97 = vadd.f32 %v93, %v95
    %v98 = vadd.f32 %v94, %v96
    %99 = vst [vmem:[#allocation8] sm:$0xff] %v97
    %100 = vst [vmem:[#allocation8 + $0x8] sm:$0xff] %v98
    // Predicated region
    $region22: #{tpu_custom_call.1} parent=1 // pred_check
      _
    $region23: #{tpu_custom_call.1} parent=1 // pred_check_branch
      %102 = sbr.rel (0) target = $region25
    $region24: #{tpu_custom_call.1} parent=1 // pred_region
      %s104 = ssub.s32 256, 256
      %105 = vsyncadd [#allocation4], %s104
      %s106 = sshll.u32 [#allocation7], 4
      %s107 = int_to_ptr.vmem [resolvable:$true] %s106
      %112 = dma.vmem_to_hbm [thread:$0]  %s107, 256, %s2, [#allocation4], 128, 128, 8
    $region25: #{tpu_custom_call.1} parent=1 // pred_fallthru
      _
    // Predicated region
    $region26: #{tpu_custom_call.1} parent=1 // pred_check
      _
    $region27: #{tpu_custom_call.1} parent=1 // pred_check_branch
      %114 = sbr.rel (0) target = $region29
    $region28: #{tpu_custom_call.1} parent=1 // pred_region
      %s116 = ssub.s32 256, 256
      %117 = vsyncadd [#allocation9], %s116
      %s118 = sshll.u32 [#allocation8], 4
      %s119 = int_to_ptr.vmem [resolvable:$true] %s118
      %124 = dma.vmem_to_hbm [thread:$0]  %s119, 256, %s3, [#allocation9], 128, 128, 8
    $region29: #{tpu_custom_call.1} parent=1 // pred_fallthru
      _
    // Predicated region
    $region30: #{tpu_custom_call.1} parent=1 // pred_check
      _
    $region31: #{tpu_custom_call.1} parent=1 // pred_check_branch
      %126 = sbr.rel (0) target = $region33
    $region32: #{tpu_custom_call.1} parent=1 // pred_region
      %127 = dma.done [#allocation4], 256
    $region33: #{tpu_custom_call.1} parent=1 // pred_fallthru
      _
    // Predicated region
    $region34: #{tpu_custom_call.1} parent=1 // pred_check
      _
    $region35: #{tpu_custom_call.1} parent=1 // pred_check_branch
      %129 = sbr.rel (0) target = $region37
    $region36: #{tpu_custom_call.1} parent=1 // pred_region
      %130 = dma.done [#allocation9], 256
    $region37: #{tpu_custom_call.1} parent=1 // pred_fallthru
      _
    %131 = vsyncpa [#allocation3], 1
    %132 = vsyncpa [#allocation6], 1
    %133 = vsyncpa [#allocation4], 1
    %134 = vsyncpa [#allocation9], 1

</llo_original>
